<compile_context>
chip_gen: v6e
topology: v6e:2x2x1
jax: 0.10.0
libtpu: 0.0.40
codegen_flags: <defaults>
</compile_context>

<pallas_src>
import functools

import jax
import jax.numpy as jnp
from jax.experimental import pallas as pl
from jax.experimental.pallas import tpu as pltpu


def _round_up(x, m):
    return (x + m - 1) // m * m


def _conv_kernel(x_ref, w_ref, b_ref, o_ref, xpad_ref, slab_ref, *,
                 tap_offsets, mv_pad, pad, h, w, wp, negative_slope):
    """Fused pad + im2col + single-matmul + bias + LeakyReLU, one batch elem.

    x_ref:    (1, C_in, H, W)   f32 raw input block
    w_ref:    (C_out, T*C_in)   bf16 folded weights (resident across steps)
    b_ref:    (C_out, 1)        f32 bias (resident)
    o_ref:    (1, C_out, Mpad)  f32 output, lane-dense (Mpad % 128 == 0)
    xpad_ref: (C_in, L)         f32 VMEM scratch: flattened zero-padded image
    slab_ref: (T*C_in, Mpad)    bf16 VMEM scratch: stacked im2col taps
    """
    c_in = x_ref.shape[1]

    # --- in-kernel zero pad: halo zeros + interior copy (row-major H, W) ---
    xpad_ref[...] = jnp.zeros_like(xpad_ref)
    xv = x_ref[0]                                   # (C_in, H, W) f32
    for r in range(h):                              # static, small trip count
        off_r = (pad + r) * wp + pad
        xpad_ref[:, off_r:off_r + w] = xv[:, r, :]

    # --- build the stacked im2col slab once: tap t -> rows [t*C_in, ...) ---
    xpad = xpad_ref[...]                            # (C_in, L) f32
    for t, off in enumerate(tap_offsets):           # static tap loop
        slab_ref[t * c_in:(t + 1) * c_in, :] = (
            xpad[:, off:off + mv_pad].astype(slab_ref.dtype))

    # --- single MXU contraction over K = C_in*KH*KW, f32 accumulation ---
    acc = jnp.dot(w_ref[...], slab_ref[...],
                  preferred_element_type=jnp.float32)   # (C_out, Mpad) f32

    # --- f32 epilogue: bias (sublane broadcast) + LeakyReLU ---
    acc = acc + b_ref[...]
    acc = jnp.where(acc >= 0, acc, negative_slope * acc)
    o_ref[0] = acc.astype(o_ref.dtype)


def conv2d_leakyrelu(x, weight, bias, *, stride=1, negative_slope=0.2,
                     compute_dtype=jnp.bfloat16):
    """Equivalent of Conv2d(C_in, C_out, k, stride, padding=(k-1)//2) + LeakyReLU(0.2).

    x:      [N, C_in, H, W]        (NCHW, like PyTorch), float32
    weight: [C_out, C_in, KH, KW]  (PyTorch layout)
    bias:   [C_out]
    returns [N, C_out, H_out, W_out]
    """
    n, c_in, h, w = x.shape
    c_out, c_in_w, kh, kw = weight.shape
    assert c_in_w == c_in and kh == kw
    pad = (kh - 1) // 2

    hp, wp = h + 2 * pad, w + 2 * pad              # padded spatial extents
    h_full = hp - kh + 1                           # stride-1 output rows
    h_out = (h + 2 * pad - kh) // stride + 1
    w_out = (w + 2 * pad - kw) // stride + 1

    # Flattened stride-1 output length (wrap-around garbage cols per row are
    # dropped in the wrapper) padded to a lane-dense multiple of 128.
    mv = h_full * wp
    mv_pad = _round_up(mv, 128)
    t = kh * kw
    # Flat offset of tap (ki, kj) in the row-major padded image.
    tap_offsets = tuple(ki * wp + kj for ki in range(kh) for kj in range(kw))
    # Padded flat image length: largest tap offset + slab width, rounded up.
    big_l = _round_up(tap_offsets[-1] + mv_pad, 128)

    # Folded weights: [C_out, C_in, KH, KW] -> [C_out, KH, KW, C_in]
    #   -> [C_out, T*C_in] so column index = t*C_in + c matches the slab rows.
    w_big = jnp.transpose(weight, (0, 2, 3, 1)).reshape(c_out, t * c_in)
    w_big = w_big.astype(compute_dtype)
    b2d = bias.reshape(c_out, 1).astype(jnp.float32)

    kernel = functools.partial(
        _conv_kernel, tap_offsets=tap_offsets, mv_pad=mv_pad, pad=pad,
        h=h, w=w, wp=wp, negative_slope=negative_slope)

    out = pl.pallas_call(
        kernel,
        out_shape=jax.ShapeDtypeStruct((n, c_out, mv_pad), x.dtype),
        grid_spec=pltpu.PrefetchScalarGridSpec(
            num_scalar_prefetch=0,
            grid=(n,),
            in_specs=[
                pl.BlockSpec((1, c_in, h, w), lambda i: (i, 0, 0, 0)),
                pl.BlockSpec((c_out, t * c_in), lambda i: (0, 0)),   # resident
                pl.BlockSpec((c_out, 1), lambda i: (0, 0)),          # resident
            ],
            out_specs=pl.BlockSpec((1, c_out, mv_pad), lambda i: (i, 0, 0)),
            scratch_shapes=[
                pltpu.VMEM((c_in, big_l), jnp.float32),        # padded image
                pltpu.VMEM((t * c_in, mv_pad), compute_dtype),  # im2col slab
            ],
        ),
        compiler_params=pltpu.CompilerParams(
            dimension_semantics=("parallel",)),
    )(x, w_big, b2d)

    # [N, C_out, Mpad] -> drop padded/garbage lanes, reshape to rows, drop the
    # (kw-1) wrap columns per row, subsample for stride.  Already channel-major.
    out = out[:, :, :mv].reshape(n, c_out, h_full, wp)
    out = out[:, :, ::stride, ::stride]
    out = out[:, :, :h_out, :w_out]
    return out


if __name__ == "__main__":
    key = jax.random.PRNGKey(0)
    k_x, k_w, k_b = jax.random.split(key, 3)

    # Module config: Conv2d(in_channels=4, out_channels=8, kernel_size=3)
    N, C_in, H, W = 2, 4, 16, 16
    C_out, K = 8, 3

    x = jax.random.normal(k_x, (N, C_in, H, W), dtype=jnp.float32)
    fan_in = C_in * K * K
    bound = 1.0 / (fan_in ** 0.5)
    weight = jax.random.uniform(k_w, (C_out, C_in, K, K),
                                minval=-bound, maxval=bound, dtype=jnp.float32)
    bias = jax.random.uniform(k_b, (C_out,),
                              minval=-bound, maxval=bound, dtype=jnp.float32)

    y = conv2d_leakyrelu(x, weight, bias, stride=1, negative_slope=0.2)
    jax.block_until_ready(y)

    # Reference with the same bf16 operand quantization and f32 accumulation.
    ref = jax.lax.conv_general_dilated(
        x.astype(jnp.bfloat16), weight.astype(jnp.bfloat16),
        window_strides=(1, 1), padding="SAME",
        dimension_numbers=("NCHW", "OIHW", "NCHW"),
        preferred_element_type=jnp.float32)
    ref = ref + bias[None, :, None, None]
    ref = jnp.where(ref >= 0, ref, 0.2 * ref)

    assert y.shape == (N, C_out, H, W)
    assert jnp.allclose(y, ref, atol=2e-3, rtol=2e-3)

    print("KERNEL_OK")
</pallas_src>

<mosaic_0001>
module attributes {stable_mosaic.version = 11 : i64} {
  func.func @_conv_kernel(%arg0: i32, %arg1: memref<1x4x16x16xf32, #tpu.memory_space<vmem>>, %arg2: memref<8x36xbf16, #tpu.memory_space<vmem>>, %arg3: memref<8x1xf32, #tpu.memory_space<vmem>>, %arg4: memref<1x8x384xf32, #tpu.memory_space<vmem>>, %arg5: memref<4x512xf32, #tpu.memory_space<vmem>>, %arg6: memref<36x384xbf16, #tpu.memory_space<vmem>>) attributes {dimension_semantics = [#tpu.dimension_semantics<parallel>], iteration_bounds = array<i64: 2>, scalar_prefetch = 0 : i64, scratch_operands = 2 : i64, tpu.core_type = #tpu.core_type<tc>, window_params = [{transform_indices = @transform_0, window_bounds = array<i64: 1, 4, 16, 16>}, {pipeline_mode = #tpu.pipeline_mode<synchronous>, transform_indices = @transform_1, window_bounds = array<i64: 8, 36>}, {pipeline_mode = #tpu.pipeline_mode<synchronous>, transform_indices = @transform_2, window_bounds = array<i64: 8, 1>}, {transform_indices = @transform_3, window_bounds = array<i64: 1, 8, 384>}]} {
    %cst = arith.constant 0.000000e+00 : f32
    %0 = vector.broadcast %cst : f32 to vector<4x512xf32>
    %c0 = arith.constant 0 : index
    %c0_0 = arith.constant 0 : index
    %1 = vector.load %arg5[%c0, %c0_0] : memref<4x512xf32, #tpu.memory_space<vmem>>, vector<4x512xf32>
    tpu.vector_store %arg5[%c0, %c0_0], %0 {strides = array<i32>} : memref<4x512xf32, #tpu.memory_space<vmem>>, vector<4x512xf32>,
    %c0_1 = arith.constant 0 : index
    %c0_2 = arith.constant 0 : index
    %c0_3 = arith.constant 0 : index
    %c0_4 = arith.constant 0 : index
    %2 = vector.load %arg1[%c0_1, %c0_2, %c0_3, %c0_4] : memref<1x4x16x16xf32, #tpu.memory_space<vmem>>, vector<1x4x16x16xf32>
    %3 = vector.shape_cast %2 : vector<1x4x16x16xf32> to vector<4x16x16xf32>
    %4 = vector.extract_strided_slice %3 {offsets = [0, 0, 0], sizes = [4, 1, 16], strides = [1, 1, 1]} : vector<4x16x16xf32> to vector<4x1x16xf32>
    %5 = vector.shape_cast %4 : vector<4x1x16xf32> to vector<4x16xf32>
    %c0_5 = arith.constant 0 : index
    %c19 = arith.constant 19 : index
    %6 = vector.load %arg5[%c0_5, %c19] : memref<4x512xf32, #tpu.memory_space<vmem>>, vector<4x16xf32>
    tpu.vector_store %arg5[%c0_5, %c19], %5 {strides = array<i32>} : memref<4x512xf32, #tpu.memory_space<vmem>>, vector<4x16xf32>,
    %7 = vector.extract_strided_slice %3 {offsets = [0, 1, 0], sizes = [4, 1, 16], strides = [1, 1, 1]} : vector<4x16x16xf32> to vector<4x1x16xf32>
    %8 = vector.shape_cast %7 : vector<4x1x16xf32> to vector<4x16xf32>
    %c0_6 = arith.constant 0 : index
    %c37 = arith.constant 37 : index
    %9 = vector.load %arg5[%c0_6, %c37] : memref<4x512xf32, #tpu.memory_space<vmem>>, vector<4x16xf32>
    tpu.vector_store %arg5[%c0_6, %c37], %8 {strides = array<i32>} : memref<4x512xf32, #tpu.memory_space<vmem>>, vector<4x16xf32>,
    %10 = vector.extract_strided_slice %3 {offsets = [0, 2, 0], sizes = [4, 1, 16], strides = [1, 1, 1]} : vector<4x16x16xf32> to vector<4x1x16xf32>
    %11 = vector.shape_cast %10 : vector<4x1x16xf32> to vector<4x16xf32>
    %c0_7 = arith.constant 0 : index
    %c55 = arith.constant 55 : index
    %12 = vector.load %arg5[%c0_7, %c55] : memref<4x512xf32, #tpu.memory_space<vmem>>, vector<4x16xf32>
    tpu.vector_store %arg5[%c0_7, %c55], %11 {strides = array<i32>} : memref<4x512xf32, #tpu.memory_space<vmem>>, vector<4x16xf32>,
    %13 = vector.extract_strided_slice %3 {offsets = [0, 3, 0], sizes = [4, 1, 16], strides = [1, 1, 1]} : vector<4x16x16xf32> to vector<4x1x16xf32>
    %14 = vector.shape_cast %13 : vector<4x1x16xf32> to vector<4x16xf32>
    %c0_8 = arith.constant 0 : index
    %c73 = arith.constant 73 : index
    %15 = vector.load %arg5[%c0_8, %c73] : memref<4x512xf32, #tpu.memory_space<vmem>>, vector<4x16xf32>
    tpu.vector_store %arg5[%c0_8, %c73], %14 {strides = array<i32>} : memref<4x512xf32, #tpu.memory_space<vmem>>, vector<4x16xf32>,
    %16 = vector.extract_strided_slice %3 {offsets = [0, 4, 0], sizes = [4, 1, 16], strides = [1, 1, 1]} : vector<4x16x16xf32> to vector<4x1x16xf32>
    %17 = vector.shape_cast %16 : vector<4x1x16xf32> to vector<4x16xf32>
    %c0_9 = arith.constant 0 : index
    %c91 = arith.constant 91 : index
    %18 = vector.load %arg5[%c0_9, %c91] : memref<4x512xf32, #tpu.memory_space<vmem>>, vector<4x16xf32>
    tpu.vector_store %arg5[%c0_9, %c91], %17 {strides = array<i32>} : memref<4x512xf32, #tpu.memory_space<vmem>>, vector<4x16xf32>,
    %19 = vector.extract_strided_slice %3 {offsets = [0, 5, 0], sizes = [4, 1, 16], strides = [1, 1, 1]} : vector<4x16x16xf32> to vector<4x1x16xf32>
    %20 = vector.shape_cast %19 : vector<4x1x16xf32> to vector<4x16xf32>
    %c0_10 = arith.constant 0 : index
    %c109 = arith.constant 109 : index
    %21 = vector.load %arg5[%c0_10, %c109] : memref<4x512xf32, #tpu.memory_space<vmem>>, vector<4x16xf32>
    tpu.vector_store %arg5[%c0_10, %c109], %20 {strides = array<i32>} : memref<4x512xf32, #tpu.memory_space<vmem>>, vector<4x16xf32>,
    %22 = vector.extract_strided_slice %3 {offsets = [0, 6, 0], sizes = [4, 1, 16], strides = [1, 1, 1]} : vector<4x16x16xf32> to vector<4x1x16xf32>
    %23 = vector.shape_cast %22 : vector<4x1x16xf32> to vector<4x16xf32>
    %c0_11 = arith.constant 0 : index
    %c127 = arith.constant 127 : index
    %24 = vector.load %arg5[%c0_11, %c127] : memref<4x512xf32, #tpu.memory_space<vmem>>, vector<4x16xf32>
    tpu.vector_store %arg5[%c0_11, %c127], %23 {strides = array<i32>} : memref<4x512xf32, #tpu.memory_space<vmem>>, vector<4x16xf32>,
    %25 = vector.extract_strided_slice %3 {offsets = [0, 7, 0], sizes = [4, 1, 16], strides = [1, 1, 1]} : vector<4x16x16xf32> to vector<4x1x16xf32>
    %26 = vector.shape_cast %25 : vector<4x1x16xf32> to vector<4x16xf32>
    %c0_12 = arith.constant 0 : index
    %c145 = arith.constant 145 : index
    %27 = vector.load %arg5[%c0_12, %c145] : memref<4x512xf32, #tpu.memory_space<vmem>>, vector<4x16xf32>
    tpu.vector_store %arg5[%c0_12, %c145], %26 {strides = array<i32>} : memref<4x512xf32, #tpu.memory_space<vmem>>, vector<4x16xf32>,
    %28 = vector.extract_strided_slice %3 {offsets = [0, 8, 0], sizes = [4, 1, 16], strides = [1, 1, 1]} : vector<4x16x16xf32> to vector<4x1x16xf32>
    %29 = vector.shape_cast %28 : vector<4x1x16xf32> to vector<4x16xf32>
    %c0_13 = arith.constant 0 : index
    %c163 = arith.constant 163 : index
    %30 = vector.load %arg5[%c0_13, %c163] : memref<4x512xf32, #tpu.memory_space<vmem>>, vector<4x16xf32>
    tpu.vector_store %arg5[%c0_13, %c163], %29 {strides = array<i32>} : memref<4x512xf32, #tpu.memory_space<vmem>>, vector<4x16xf32>,
    %31 = vector.extract_strided_slice %3 {offsets = [0, 9, 0], sizes = [4, 1, 16], strides = [1, 1, 1]} : vector<4x16x16xf32> to vector<4x1x16xf32>
    %32 = vector.shape_cast %31 : vector<4x1x16xf32> to vector<4x16xf32>
    %c0_14 = arith.constant 0 : index
    %c181 = arith.constant 181 : index
    %33 = vector.load %arg5[%c0_14, %c181] : memref<4x512xf32, #tpu.memory_space<vmem>>, vector<4x16xf32>
    tpu.vector_store %arg5[%c0_14, %c181], %32 {strides = array<i32>} : memref<4x512xf32, #tpu.memory_space<vmem>>, vector<4x16xf32>,
    %34 = vector.extract_strided_slice %3 {offsets = [0, 10, 0], sizes = [4, 1, 16], strides = [1, 1, 1]} : vector<4x16x16xf32> to vector<4x1x16xf32>
    %35 = vector.shape_cast %34 : vector<4x1x16xf32> to vector<4x16xf32>
    %c0_15 = arith.constant 0 : index
    %c199 = arith.constant 199 : index
    %36 = vector.load %arg5[%c0_15, %c199] : memref<4x512xf32, #tpu.memory_space<vmem>>, vector<4x16xf32>
    tpu.vector_store %arg5[%c0_15, %c199], %35 {strides = array<i32>} : memref<4x512xf32, #tpu.memory_space<vmem>>, vector<4x16xf32>,
    %37 = vector.extract_strided_slice %3 {offsets = [0, 11, 0], sizes = [4, 1, 16], strides = [1, 1, 1]} : vector<4x16x16xf32> to vector<4x1x16xf32>
    %38 = vector.shape_cast %37 : vector<4x1x16xf32> to vector<4x16xf32>
    %c0_16 = arith.constant 0 : index
    %c217 = arith.constant 217 : index
    %39 = vector.load %arg5[%c0_16, %c217] : memref<4x512xf32, #tpu.memory_space<vmem>>, vector<4x16xf32>
    tpu.vector_store %arg5[%c0_16, %c217], %38 {strides = array<i32>} : memref<4x512xf32, #tpu.memory_space<vmem>>, vector<4x16xf32>,
    %40 = vector.extract_strided_slice %3 {offsets = [0, 12, 0], sizes = [4, 1, 16], strides = [1, 1, 1]} : vector<4x16x16xf32> to vector<4x1x16xf32>
    %41 = vector.shape_cast %40 : vector<4x1x16xf32> to vector<4x16xf32>
    %c0_17 = arith.constant 0 : index
    %c235 = arith.constant 235 : index
    %42 = vector.load %arg5[%c0_17, %c235] : memref<4x512xf32, #tpu.memory_space<vmem>>, vector<4x16xf32>
    tpu.vector_store %arg5[%c0_17, %c235], %41 {strides = array<i32>} : memref<4x512xf32, #tpu.memory_space<vmem>>, vector<4x16xf32>,
    %43 = vector.extract_strided_slice %3 {offsets = [0, 13, 0], sizes = [4, 1, 16], strides = [1, 1, 1]} : vector<4x16x16xf32> to vector<4x1x16xf32>
    %44 = vector.shape_cast %43 : vector<4x1x16xf32> to vector<4x16xf32>
    %c0_18 = arith.constant 0 : index
    %c253 = arith.constant 253 : index
    %45 = vector.load %arg5[%c0_18, %c253] : memref<4x512xf32, #tpu.memory_space<vmem>>, vector<4x16xf32>
    tpu.vector_store %arg5[%c0_18, %c253], %44 {strides = array<i32>} : memref<4x512xf32, #tpu.memory_space<vmem>>, vector<4x16xf32>,
    %46 = vector.extract_strided_slice %3 {offsets = [0, 14, 0], sizes = [4, 1, 16], strides = [1, 1, 1]} : vector<4x16x16xf32> to vector<4x1x16xf32>
    %47 = vector.shape_cast %46 : vector<4x1x16xf32> to vector<4x16xf32>
    %c0_19 = arith.constant 0 : index
    %c271 = arith.constant 271 : index
    %48 = vector.load %arg5[%c0_19, %c271] : memref<4x512xf32, #tpu.memory_space<vmem>>, vector<4x16xf32>
    tpu.vector_store %arg5[%c0_19, %c271], %47 {strides = array<i32>} : memref<4x512xf32, #tpu.memory_space<vmem>>, vector<4x16xf32>,
    %49 = vector.extract_strided_slice %3 {offsets = [0, 15, 0], sizes = [4, 1, 16], strides = [1, 1, 1]} : vector<4x16x16xf32> to vector<4x1x16xf32>
    %50 = vector.shape_cast %49 : vector<4x1x16xf32> to vector<4x16xf32>
    %c0_20 = arith.constant 0 : index
    %c289 = arith.constant 289 : index
    %51 = vector.load %arg5[%c0_20, %c289] : memref<4x512xf32, #tpu.memory_space<vmem>>, vector<4x16xf32>
    tpu.vector_store %arg5[%c0_20, %c289], %50 {strides = array<i32>} : memref<4x512xf32, #tpu.memory_space<vmem>>, vector<4x16xf32>,
    %c0_21 = arith.constant 0 : index
    %c0_22 = arith.constant 0 : index
    %52 = vector.load %arg5[%c0_21, %c0_22] : memref<4x512xf32, #tpu.memory_space<vmem>>, vector<4x512xf32>
    %53 = vector.extract_strided_slice %52 {offsets = [0, 0], sizes = [4, 384], strides = [1, 1]} : vector<4x512xf32> to vector<4x384xf32>
    %54 = arith.truncf %53 : vector<4x384xf32> to vector<4x384xbf16>
    %c0_23 = arith.constant 0 : index
    %c0_24 = arith.constant 0 : index
    %55 = vector.load %arg6[%c0_23, %c0_24] : memref<36x384xbf16, #tpu.memory_space<vmem>>, vector<4x384xbf16>
    tpu.vector_store %arg6[%c0_23, %c0_24], %54 {strides = array<i32>} : memref<36x384xbf16, #tpu.memory_space<vmem>>, vector<4x384xbf16>,
    %56 = vector.extract_strided_slice %52 {offsets = [0, 1], sizes = [4, 384], strides = [1, 1]} : vector<4x512xf32> to vector<4x384xf32>
    %57 = arith.truncf %56 : vector<4x384xf32> to vector<4x384xbf16>
    %c4 = arith.constant 4 : index
    %c0_25 = arith.constant 0 : index
    %58 = vector.load %arg6[%c4, %c0_25] : memref<36x384xbf16, #tpu.memory_space<vmem>>, vector<4x384xbf16>
    tpu.vector_store %arg6[%c4, %c0_25], %57 {strides = array<i32>} : memref<36x384xbf16, #tpu.memory_space<vmem>>, vector<4x384xbf16>,
    %59 = vector.extract_strided_slice %52 {offsets = [0, 2], sizes = [4, 384], strides = [1, 1]} : vector<4x512xf32> to vector<4x384xf32>
    %60 = arith.truncf %59 : vector<4x384xf32> to vector<4x384xbf16>
    %c8 = arith.constant 8 : index
    %c0_26 = arith.constant 0 : index
    %61 = vector.load %arg6[%c8, %c0_26] : memref<36x384xbf16, #tpu.memory_space<vmem>>, vector<4x384xbf16>
    tpu.vector_store %arg6[%c8, %c0_26], %60 {strides = array<i32>} : memref<36x384xbf16, #tpu.memory_space<vmem>>, vector<4x384xbf16>,
    %62 = vector.extract_strided_slice %52 {offsets = [0, 18], sizes = [4, 384], strides = [1, 1]} : vector<4x512xf32> to vector<4x384xf32>
    %63 = arith.truncf %62 : vector<4x384xf32> to vector<4x384xbf16>
    %c12 = arith.constant 12 : index
    %c0_27 = arith.constant 0 : index
    %64 = vector.load %arg6[%c12, %c0_27] : memref<36x384xbf16, #tpu.memory_space<vmem>>, vector<4x384xbf16>
    tpu.vector_store %arg6[%c12, %c0_27], %63 {strides = array<i32>} : memref<36x384xbf16, #tpu.memory_space<vmem>>, vector<4x384xbf16>,
    %65 = vector.extract_strided_slice %52 {offsets = [0, 19], sizes = [4, 384], strides = [1, 1]} : vector<4x512xf32> to vector<4x384xf32>
    %66 = arith.truncf %65 : vector<4x384xf32> to vector<4x384xbf16>
    %c16 = arith.constant 16 : index
    %c0_28 = arith.constant 0 : index
    %67 = vector.load %arg6[%c16, %c0_28] : memref<36x384xbf16, #tpu.memory_space<vmem>>, vector<4x384xbf16>
    tpu.vector_store %arg6[%c16, %c0_28], %66 {strides = array<i32>} : memref<36x384xbf16, #tpu.memory_space<vmem>>, vector<4x384xbf16>,
    %68 = vector.extract_strided_slice %52 {offsets = [0, 20], sizes = [4, 384], strides = [1, 1]} : vector<4x512xf32> to vector<4x384xf32>
    %69 = arith.truncf %68 : vector<4x384xf32> to vector<4x384xbf16>
    %c20 = arith.constant 20 : index
    %c0_29 = arith.constant 0 : index
    %70 = vector.load %arg6[%c20, %c0_29] : memref<36x384xbf16, #tpu.memory_space<vmem>>, vector<4x384xbf16>
    tpu.vector_store %arg6[%c20, %c0_29], %69 {strides = array<i32>} : memref<36x384xbf16, #tpu.memory_space<vmem>>, vector<4x384xbf16>,
    %71 = vector.extract_strided_slice %52 {offsets = [0, 36], sizes = [4, 384], strides = [1, 1]} : vector<4x512xf32> to vector<4x384xf32>
    %72 = arith.truncf %71 : vector<4x384xf32> to vector<4x384xbf16>
    %c24 = arith.constant 24 : index
    %c0_30 = arith.constant 0 : index
    %73 = vector.load %arg6[%c24, %c0_30] : memref<36x384xbf16, #tpu.memory_space<vmem>>, vector<4x384xbf16>
    tpu.vector_store %arg6[%c24, %c0_30], %72 {strides = array<i32>} : memref<36x384xbf16, #tpu.memory_space<vmem>>, vector<4x384xbf16>,
    %74 = vector.extract_strided_slice %52 {offsets = [0, 37], sizes = [4, 384], strides = [1, 1]} : vector<4x512xf32> to vector<4x384xf32>
    %75 = arith.truncf %74 : vector<4x384xf32> to vector<4x384xbf16>
    %c28 = arith.constant 28 : index
    %c0_31 = arith.constant 0 : index
    %76 = vector.load %arg6[%c28, %c0_31] : memref<36x384xbf16, #tpu.memory_space<vmem>>, vector<4x384xbf16>
    tpu.vector_store %arg6[%c28, %c0_31], %75 {strides = array<i32>} : memref<36x384xbf16, #tpu.memory_space<vmem>>, vector<4x384xbf16>,
    %77 = vector.extract_strided_slice %52 {offsets = [0, 38], sizes = [4, 384], strides = [1, 1]} : vector<4x512xf32> to vector<4x384xf32>
    %78 = arith.truncf %77 : vector<4x384xf32> to vector<4x384xbf16>
    %c32 = arith.constant 32 : index
    %c0_32 = arith.constant 0 : index
    %79 = vector.load %arg6[%c32, %c0_32] : memref<36x384xbf16, #tpu.memory_space<vmem>>, vector<4x384xbf16>
    tpu.vector_store %arg6[%c32, %c0_32], %78 {strides = array<i32>} : memref<36x384xbf16, #tpu.memory_space<vmem>>, vector<4x384xbf16>,
    %c0_33 = arith.constant 0 : index
    %c0_34 = arith.constant 0 : index
    %80 = vector.load %arg2[%c0_33, %c0_34] : memref<8x36xbf16, #tpu.memory_space<vmem>>, vector<8x36xbf16>
    %c0_35 = arith.constant 0 : index
    %c0_36 = arith.constant 0 : index
    %81 = vector.load %arg6[%c0_35, %c0_36] : memref<36x384xbf16, #tpu.memory_space<vmem>>, vector<36x384xbf16>
    %cst_37 = arith.constant dense<0.000000e+00> : vector<8x384xf32>
    %82 = tpu.matmul %80, %81, %cst_37 {dimension_numbers = #tpu.dot_dimension_numbers<[1], [0], [0], [1], [0, 0, 1, 1], [], []>} : vector<8x36xbf16>, vector<36x384xbf16>, vector<8x384xf32> -> vector<8x384xf32>
    %c0_38 = arith.constant 0 : index
    %c0_39 = arith.constant 0 : index
    %83 = vector.load %arg3[%c0_38, %c0_39] : memref<8x1xf32, #tpu.memory_space<vmem>>, vector<8x1xf32>
    %84 = vector.broadcast %83 : vector<8x1xf32> to vector<8x384xf32>
    %85 = arith.addf %82, %84 : vector<8x384xf32>
    %cst_40 = arith.constant 0.000000e+00 : f32
    %86 = vector.broadcast %cst_40 : f32 to vector<8x384xf32>
    %87 = arith.cmpf oge, %85, %86 : vector<8x384xf32>
    %cst_41 = arith.constant 2.000000e-01 : f32
    %88 = vector.broadcast %cst_41 : f32 to vector<8x384xf32>
    %89 = arith.mulf %88, %85 : vector<8x384xf32>
    %90 = arith.select %87, %85, %89 : vector<8x384xi1>, vector<8x384xf32>
    %c0_42 = arith.constant 0 : index
    %c0_43 = arith.constant 0 : index
    %c0_44 = arith.constant 0 : index
    %91 = vector.load %arg4[%c0_42, %c0_43, %c0_44] : memref<1x8x384xf32, #tpu.memory_space<vmem>>, vector<1x8x384xf32>
    %92 = vector.shape_cast %91 : vector<1x8x384xf32> to vector<8x384xf32>
    %93 = vector.shape_cast %90 : vector<8x384xf32> to vector<1x8x384xf32>
    tpu.vector_store %arg4[%c0_42, %c0_43, %c0_44], %93 {strides = array<i32>} : memref<1x8x384xf32, #tpu.memory_space<vmem>>, vector<1x8x384xf32>,
    return
  }
  func.func @transform_0(%arg0: i32) -> (i32, i32, i32, i32) {
    %c0_i32 = arith.constant 0 : i32
    %c0_i32_0 = arith.constant 0 : i32
    %c0_i32_1 = arith.constant 0 : i32
    %c0_i32_2 = arith.constant 0 : i32
    return %arg0, %c0_i32, %c0_i32_0, %c0_i32_1 : i32, i32, i32, i32
  }
  func.func @transform_1(%arg0: i32) -> (i32, i32) {
    %c0_i32 = arith.constant 0 : i32
    %c0_i32_0 = arith.constant 0 : i32
    %c0_i32_1 = arith.constant 0 : i32
    return %c0_i32, %c0_i32_0 : i32, i32
  }
  func.func @transform_2(%arg0: i32) -> (i32, i32) {
    %c0_i32 = arith.constant 0 : i32
    %c0_i32_0 = arith.constant 0 : i32
    %c0_i32_1 = arith.constant 0 : i32
    return %c0_i32, %c0_i32_0 : i32, i32
  }
  func.func @transform_3(%arg0: i32) -> (i32, i32, i32) {
    %c0_i32 = arith.constant 0 : i32
    %c0_i32_0 = arith.constant 0 : i32
    %c0_i32_1 = arith.constant 0 : i32
    return %arg0, %c0_i32, %c0_i32_0 : i32, i32, i32
  }
}

</mosaic_0001>

<llo_original>
// kernel: tpu_custom_call.1
$region0: #{tpu_custom_call.1}
  #allocation0 [shape = 'u32[]', space=smem, size = 0x4, offset = 0x4, fixed_abs, tag = 'smem constant byte address 0x4 - core index']
  #allocation1 [shape = 'u32[144,128]{1,0:T(1,128)}', space=vmem, size = 0x12000, scoped, tag = 'internal scratch']
  #allocation2 [shape = 'f32[4,512]{1,0:T(4,128)}', space=vmem, size = 0x2000, scoped, tag = 'scratch operand']
  #allocation3 [shape = 'bf16[36,384]{1,0:T(8,128)(2,1)}', space=vmem, size = 0x7800, scoped, tag = 'scratch operand']
  %s0 = inlined_call_operand.hbm [shape: f32[2,4,16,16], index: 0, kind: input, shape index: {}]
  %s1 = inlined_call_operand.vmem [shape: bf16[8,36], index: 1, kind: input, shape index: {}]
  %s2 = inlined_call_operand.vmem [shape: f32[8,1], index: 2, kind: input, shape index: {}]
  %s3 = inlined_call_operand.hbm [shape: f32[2,8,384], index: 3, kind: output, shape index: {}]
  %s4 = sld [smem:[#allocation0]]
  $region49: #{tpu_custom_call.1} parent=0
    _
  %s6 = ssub.s32 1, %s4
  %s7 = scalar_select 0, %s6, %s4
  $region1: #{tpu_custom_call.1} parent=0
    #allocation4 [shape = 'u8[65536]{0}', space=vmem, size = 0x10000, scoped, tag = 'input window, operand 0']
    #allocation5 [shape = 's32[2]{0}', space=sflag, size = 0x8, scoped, tag = 'scoped memory for tpu_custom_call.1']
    #allocation6 [shape = 's32[2]{0}', space=sflag, size = 0x8, scoped, tag = 'scoped memory for tpu_custom_call.1']
    #allocation7 [shape = 'u8[24576]{0}', space=vmem, size = 0x6000, scoped, tag = 'output window, operand 0']
    %8 = vsyncpa [#allocation5], 0
    %s9 = scalar_lea.sflag [#allocation5], 1
    %10 = vsyncpa %s9, 0
    %11 = vsyncpa [#allocation6], 0
    %s12 = scalar_lea.sflag [#allocation6], 1
    %13 = vsyncpa %s12, 0
    loop: start=0, step=1, limit=4
    $region2: #{tpu_custom_call.1} parent=1 // loop_pre_header
      _
    $region3: #{tpu_custom_call.1} parent=1 // loop_header
      %s15 = sphi 0, %s19
      %p16 = scmp.ge.s32.totalorder %s15, 4
      %s25 = sphi 0, %s27
      %s28 = sphi 0, %s25
      %s29 = sphi 0, %s28
      %s45 = sphi 0, %s29
      %s49 = sphi 0, %s49
      %s51 = sphi 0, %s49
      %s52 = sphi 0, %s51
      %s66 = sphi 0, %s52
      %s70 = sphi 0, %s70
      %s72 = sphi 0, %s70
      %s73 = sphi 0, %s72
      %s87 = sphi 0, %s73
      %s93 = sphi 0, %s95
      %s96 = sphi 0, %s93
      %s97 = sphi 0, %s96
      %s113 = sphi 0, %s97
    $region4: #{tpu_custom_call.1} parent=1 // loop_header_branch
      %18 = sbr.rel (%p16) target = $region8
    $region5: #{tpu_custom_call.1} parent=1 // loop_body
      %s20 = ssub.s32 %s15, 1
      %s21 = ssub.s32 %s15, 2
      %s22 = sadd.s32 %s15, 1
      %s23 = ssub.s32 %s15, %s22
      %p24 = scmp.eq.s32.totalorder %s23, 0
      %s26 = sadd.s32 %s25, 1
      %s27 = scalar_select %p24, %s25, %s26
      %p30 = pneg %p24
      %p31 = scmp.eq.s32.totalorder %s15, 1
      %p32 = por %p30, %p31
      %p33 = scmp.ne.s32.totalorder %s25, %s28
      %p34 = scmp.eq.s32.totalorder %s15, 0
      %p35 = por %p33, %p34
      %p36 = scmp.ne.s32.totalorder %s25, %s28
      %p37 = scmp.eq.s32.totalorder %s20, 1
      %p38 = por %p36, %p37
      %p39 = scmp.ne.s32.totalorder %s28, %s29
      %p40 = scmp.eq.s32.totalorder %s20, 0
      %p41 = por %p39, %p40
      %p42 = scmp.ne.s32.totalorder %s28, %s29
      %p43 = scmp.eq.s32.totalorder %s21, 1
      %p44 = por %p42, %p43
      %p46 = scmp.ne.s32.totalorder %s29, %s45
      %p47 = scmp.eq.s32.totalorder %s21, 0
      %p48 = por %p46, %p47
      %s50 = sadd.s32 %s49, 1
      %p53 = scmp.eq.s32.totalorder %s15, 1
      %p54 = scmp.ne.s32.totalorder %s49, %s51
      %p55 = scmp.eq.s32.totalorder %s15, 0
      %p56 = por %p54, %p55
      %p57 = scmp.ne.s32.totalorder %s49, %s51
      %p58 = scmp.eq.s32.totalorder %s20, 1
      %p59 = por %p57, %p58
      %p60 = scmp.ne.s32.totalorder %s51, %s52
      %p61 = scmp.eq.s32.totalorder %s20, 0
      %p62 = por %p60, %p61
      %p63 = scmp.ne.s32.totalorder %s51, %s52
      %p64 = scmp.eq.s32.totalorder %s21, 1
      %p65 = por %p63, %p64
      %p67 = scmp.ne.s32.totalorder %s52, %s66
      %p68 = scmp.eq.s32.totalorder %s21, 0
      %p69 = por %p67, %p68
      %s71 = sadd.s32 %s70, 1
      %p74 = scmp.eq.s32.totalorder %s15, 1
      %p75 = scmp.ne.s32.totalorder %s70, %s72
      %p76 = scmp.eq.s32.totalorder %s15, 0
      %p77 = por %p75, %p76
      %p78 = scmp.ne.s32.totalorder %s70, %s72
      %p79 = scmp.eq.s32.totalorder %s20, 1
      %p80 = por %p78, %p79
      %p81 = scmp.ne.s32.totalorder %s72, %s73
      %p82 = scmp.eq.s32.totalorder %s20, 0
      %p83 = por %p81, %p82
      %p84 = scmp.ne.s32.totalorder %s72, %s73
      %p85 = scmp.eq.s32.totalorder %s21, 1
      %p86 = por %p84, %p85
      %p88 = scmp.ne.s32.totalorder %s73, %s87
      %p89 = scmp.eq.s32.totalorder %s21, 0
      %p90 = por %p88, %p89
      %s91 = ssub.s32 %s15, %s22
      %p92 = scmp.eq.s32.totalorder %s91, 0
      %s94 = sadd.s32 %s93, 1
      %s95 = scalar_select %p92, %s93, %s94
      %p98 = pneg %p92
      %p99 = scmp.eq.s32.totalorder %s15, 1
      %p100 = por %p98, %p99
      %p101 = scmp.ne.s32.totalorder %s93, %s96
      %p102 = scmp.eq.s32.totalorder %s15, 0
      %p103 = por %p101, %p102
      %p104 = scmp.ne.s32.totalorder %s93, %s96
      %p105 = scmp.eq.s32.totalorder %s20, 1
      %p106 = por %p104, %p105
      %p107 = scmp.ne.s32.totalorder %s96, %s97
      %p108 = scmp.eq.s32.totalorder %s20, 0
      %p109 = por %p107, %p108
      %p110 = scmp.ne.s32.totalorder %s96, %s97
      %p111 = scmp.eq.s32.totalorder %s21, 1
      %p112 = por %p110, %p111
      %p114 = scmp.ne.s32.totalorder %s97, %s113
      %p115 = scmp.eq.s32.totalorder %s21, 0
      %p116 = por %p114, %p115
      %p117 = scmp.le.s32.totalorder 1, %s15
      %p118 = scmp.lt.s32.totalorder %s15, 3
      %p119 = pnand %p117, %p118
      %p120 = pneg %p119
      // Predicated region
      $region9: #{tpu_custom_call.1} parent=5 // pred_check
        _
      $region10: #{tpu_custom_call.1} parent=5 // pred_check_branch
        %122 = sbr.rel (%p119) target = $region12
      $region11: #{tpu_custom_call.1} parent=5 // pred_region
        %s123 = ssub.s32 %s15, 1
        // Predicated region
        $region13: #{tpu_custom_call.1} parent=11 // pred_check
          %p124 = pneg %p62
        $region14: #{tpu_custom_call.1} parent=11 // pred_check_branch
          %126 = sbr.rel (%p124) target = $region16
        $region15: #{tpu_custom_call.1} parent=11 // pred_region
          _
        $region16: #{tpu_custom_call.1} parent=11 // pred_fallthru
          _
        // Predicated region
        $region17: #{tpu_custom_call.1} parent=11 // pred_check
          %p127 = pneg %p83
        $region18: #{tpu_custom_call.1} parent=11 // pred_check_branch
          %129 = sbr.rel (%p127) target = $region20
        $region19: #{tpu_custom_call.1} parent=11 // pred_region
          _
        $region20: #{tpu_custom_call.1} parent=11 // pred_fallthru
          _
      $region12: #{tpu_custom_call.1} parent=5 // pred_fallthru
        _
      %p130 = scmp.lt.s32.totalorder %s15, 2
      // Predicated region
      $region21: #{tpu_custom_call.1} parent=5 // pred_check
        %p131 = pneg %p130
      $region22: #{tpu_custom_call.1} parent=5 // pred_check_branch
        %133 = sbr.rel (%p131) target = $region24
      $region23: #{tpu_custom_call.1} parent=5 // pred_region
        // Predicated region
        $region25: #{tpu_custom_call.1} parent=23 // pred_check
          %p134 = pneg %p35
        $region26: #{tpu_custom_call.1} parent=23 // pred_check_branch
          %136 = sbr.rel (%p134) target = $region28
        $region27: #{tpu_custom_call.1} parent=23 // pred_region
          %s137 = sand.u32 %s25, 1
          %s138 = scalar_lea.sflag [#allocation5], %s137
          %s139 = sand.u32 %s25, 1
          %s140 = smul.addr %s139, 64
          %s141 = scalar_lea.vmem [#allocation4], %s140
          %s143 = ssub.s32 1024, 1024
          %144 = vsyncadd %s138, %s143
          %s145 = smul.addr %s15, 8
          %s146 = smul.addr %s145, 128
          %s147 = scalar_lea.hbm %s0, %s146
          %s148 = sshll.u32 %s141, 4
          %s149 = int_to_ptr.vmem [resolvable:$true] %s148
          %154 = dma.hbm_to_vmem [thread:$0]  %s147, 1024, %s149, %s138, 128, 128, 8
        $region28: #{tpu_custom_call.1} parent=23 // pred_fallthru
          _
      $region24: #{tpu_custom_call.1} parent=5 // pred_fallthru
        _
      %p155 = scmp.le.s32.totalorder 1, %s15
      %p156 = scmp.lt.s32.totalorder %s15, 3
      %p157 = pnand %p155, %p156
      %p158 = pneg %p157
      // Predicated region
      $region29: #{tpu_custom_call.1} parent=5 // pred_check
        _
      $region30: #{tpu_custom_call.1} parent=5 // pred_check_branch
        %160 = sbr.rel (%p157) target = $region32
      $region31: #{tpu_custom_call.1} parent=5 // pred_region
        %s161 = ssub.s32 %s15, 1
        %s162 = sand.u32 %s28, 1
        %s163 = scalar_lea.sflag [#allocation5], %s162
        %s164 = sand.u32 %s28, 1
        %s165 = smul.addr %s164, 64
        %s166 = scalar_lea.vmem [#allocation4], %s165
        // Predicated region
        $region33: #{tpu_custom_call.1} parent=31 // pred_check
          %p167 = pneg %p41
        $region34: #{tpu_custom_call.1} parent=31 // pred_check_branch
          %169 = sbr.rel (%p167) target = $region36
        $region35: #{tpu_custom_call.1} parent=31 // pred_region
          %170 = dma.done %s163, 1024
        $region36: #{tpu_custom_call.1} parent=31 // pred_fallthru
          _
        %s171 = sand.u32 %s28, 1
        %s172 = scalar_lea.sflag [#allocation5], %s171
        %s173 = sand.u32 %s28, 1
        %s174 = smul.addr %s173, 64
        %s175 = scalar_lea.vmem [#allocation4], %s174
        %p176 = pneg %p41
        %p177 = pneg %p38
        %p178 = pneg %p62
        %p179 = pneg %p59
        %p180 = pneg %p83
        %p181 = pneg %p80
        %p182 = pneg %p109
        %p183 = pneg %p106
        %s184 = sand.u32 %s96, 1
        %s185 = scalar_lea.sflag [#allocation6], %s184
        %s186 = sand.u32 %s96, 1
        %s187 = smul.addr %s186, 24
        %s188 = scalar_lea.vmem [#allocation7], %s187
        %190 = vst [vmem:[#allocation2] sm:$0xff] 0.0
        %191 = vst [vmem:[#allocation2 + $0x8] sm:$0xff] 0.0
        %v192 = vld [vmem:[%s166] sm:$0xff]
        %v193 = vld [vmem:[%s166 + $0x8] sm:$0xff]
        %v194 = vld [vmem:[%s166 + $0x10] sm:$0xff]
        %v195 = vld [vmem:[%s166 + $0x18] sm:$0xff]
        %v196 = vld [vmem:[%s166 + $0x20] sm:$0xff]
        %v197 = vld [vmem:[%s166 + $0x28] sm:$0xff]
        %v198 = vld [vmem:[%s166 + $0x30] sm:$0xff]
        %v199 = vld [vmem:[%s166 + $0x38] sm:$0xff]
        %v204 = vrot.slane %v194, 7
        %vm205 = vcmask 1041409
        %v206 = vsel %vm205, %v204, %v192
        %vm207 = vcmask 1045509
        %v208 = vsel %vm207, %v204, %v206
        %v209 = vrot.slane %v196, 6
        %vm210 = vcmask 1042434
        %v211 = vsel %vm210, %v209, %v208
        %vm212 = vcmask 1046534
        %v213 = vsel %vm212, %v209, %v211
        %v214 = vrot.slane %v198, 5
        %vm215 = vcmask 1043459
        %v216 = vsel %vm215, %v214, %v213
        %vm217 = vcmask 1047559
        %v218 = vsel %vm217, %v214, %v216
        %219 = vrot.lane.b32.xlu0 %v218, 19
        %v220 = vpop.permute.xlu0 %219
        %vm222 = vcmask 281752
        %223 = vst.msk [vmem:[#allocation2] sm:$0xf] %vm222, %v220
        %v224 = vrot.slane %v192, 1
        %v225 = vsel %vm205, %v194, %v224
        %v226 = vsel %vm207, %v194, %v225
        %v227 = vrot.slane %v196, 7
        %v228 = vsel %vm210, %v227, %v226
        %v229 = vsel %vm212, %v227, %v228
        %v230 = vrot.slane %v198, 6
        %v231 = vsel %vm215, %v230, %v229
        %v232 = vsel %vm217, %v230, %v231
        %233 = vrot.lane.b32.xlu0 %v232, 37
        %v234 = vpop.permute.xlu0 %233
        %vm236 = vcmask 429352
        %237 = vst.msk [vmem:[#allocation2] sm:$0xf] %vm236, %v234
        %v238 = vrot.slane %v192, 2
        %v239 = vrot.slane %v194, 1
        %v240 = vsel %vm205, %v239, %v238
        %v241 = vsel %vm207, %v239, %v240
        %v242 = vsel %vm210, %v196, %v241
        %v243 = vsel %vm212, %v196, %v242
        %v244 = vrot.slane %v198, 7
        %v245 = vsel %vm215, %v244, %v243
        %v246 = vsel %vm217, %v244, %v245
        %247 = vrot.lane.b32.xlu0 %v246, 55
        %v248 = vpop.permute.xlu0 %247
        %vm250 = vcmask 576952
        %251 = vst.msk [vmem:[#allocation2] sm:$0xf] %vm250, %v248
        %v252 = vrot.slane %v192, 3
        %v253 = vrot.slane %v194, 2
        %v254 = vsel %vm205, %v253, %v252
        %v255 = vsel %vm207, %v253, %v254
        %v256 = vrot.slane %v196, 1
        %v257 = vsel %vm210, %v256, %v255
        %v258 = vsel %vm212, %v256, %v257
        %v259 = vsel %vm215, %v198, %v258
        %v260 = vsel %vm217, %v198, %v259
        %261 = vrot.lane.b32.xlu0 %v260, 73
        %v262 = vpop.permute.xlu0 %261
        %vm264 = vcmask 724552
        %265 = vst.msk [vmem:[#allocation2] sm:$0xf] %vm264, %v262
        %v266 = vcombine.high %v192, %v192
        %v267 = vcombine.high %v194, %v194
        %v268 = vcombine.high %v196, %v196
        %v269 = vcombine.high %v198, %v198
        %v270 = vrot.slane %v267, 7
        %v271 = vsel %vm205, %v270, %v266
        %v272 = vsel %vm207, %v270, %v271
        %v273 = vrot.slane %v268, 6
        %v274 = vsel %vm210, %v273, %v272
        %v275 = vsel %vm212, %v273, %v274
        %v276 = vrot.slane %v269, 5
        %v277 = vsel %vm215, %v276, %v275
        %v278 = vsel %vm217, %v276, %v277
        %279 = vrot.lane.b32.xlu0 %v278, 91
        %v280 = vpop.permute.xlu0 %279
        %vm282 = vcmask 872152
        %283 = vst.msk [vmem:[#allocation2] sm:$0xf] %vm282, %v280
        %v284 = vrot.slane %v266, 1
        %v285 = vsel %vm205, %v267, %v284
        %v286 = vsel %vm207, %v267, %v285
        %v287 = vrot.slane %v268, 7
        %v288 = vsel %vm210, %v287, %v286
        %v289 = vsel %vm212, %v287, %v288
        %v290 = vrot.slane %v269, 6
        %v291 = vsel %vm215, %v290, %v289
        %v292 = vsel %vm217, %v290, %v291
        %293 = vrot.lane.b32.xlu0 %v292, 109
        %v294 = vpop.permute.xlu0 %293
        %vm296 = vcmask 1019752
        %297 = vst.msk [vmem:[#allocation2] sm:$0xf] %vm296, %v294
        %v298 = vrot.slane %v266, 2
        %v299 = vrot.slane %v267, 1
        %v300 = vsel %vm205, %v299, %v298
        %v301 = vsel %vm207, %v299, %v300
        %v302 = vsel %vm210, %v268, %v301
        %v303 = vsel %vm212, %v268, %v302
        %v304 = vrot.slane %v269, 7
        %v305 = vsel %vm215, %v304, %v303
        %v306 = vsel %vm217, %v304, %v305
        %307 = vrot.lane.b32.xlu0 %v306, 127
        %v308 = vpop.permute.xlu0 %307
        %v309 = vrot.slane %v308, 4
        %vm310 = vcmask 1039360
        %v311 = vsel %vm310, %v309, %v308
        %vm313 = vcmask 1044472
        %vm314 = vcmask 121860
        %vm315 = vmor %vm314, %vm313
        %316 = vst.msk [vmem:[#allocation2] sm:$0xff] %vm315, %v311
        %v317 = vrot.slane %v266, 3
        %v318 = vrot.slane %v267, 2
        %v319 = vsel %vm205, %v318, %v317
        %v320 = vsel %vm207, %v318, %v319
        %v321 = vrot.slane %v268, 1
        %v322 = vsel %vm210, %v321, %v320
        %v323 = vsel %vm212, %v321, %v322
        %v324 = vsel %vm215, %v269, %v323
        %v325 = vsel %vm217, %v269, %v324
        %326 = vrot.lane.b32.xlu0 %v325, 17
        %v327 = vpop.permute.xlu0 %326
        %vm329 = vcmask 265352
        %330 = vst.msk [vmem:[#allocation2 + $0x4] sm:$0xf] %vm329, %v327
        %v335 = vrot.slane %v195, 7
        %v336 = vsel %vm205, %v335, %v193
        %v337 = vsel %vm207, %v335, %v336
        %v338 = vrot.slane %v197, 6
        %v339 = vsel %vm210, %v338, %v337
        %v340 = vsel %vm212, %v338, %v339
        %v341 = vrot.slane %v199, 5
        %v342 = vsel %vm215, %v341, %v340
        %v343 = vsel %vm217, %v341, %v342
        %344 = vrot.lane.b32.xlu0 %v343, 35
        %v345 = vpop.permute.xlu0 %344
        %vm347 = vcmask 412952
        %348 = vst.msk [vmem:[#allocation2 + $0x4] sm:$0xf] %vm347, %v345
        %v349 = vrot.slane %v193, 1
        %v350 = vsel %vm205, %v195, %v349
        %v351 = vsel %vm207, %v195, %v350
        %v352 = vrot.slane %v197, 7
        %v353 = vsel %vm210, %v352, %v351
        %v354 = vsel %vm212, %v352, %v353
        %v355 = vrot.slane %v199, 6
        %v356 = vsel %vm215, %v355, %v354
        %v357 = vsel %vm217, %v355, %v356
        %358 = vrot.lane.b32.xlu0 %v357, 53
        %v359 = vpop.permute.xlu0 %358
        %vm361 = vcmask 560552
        %362 = vst.msk [vmem:[#allocation2 + $0x4] sm:$0xf] %vm361, %v359
        %v363 = vrot.slane %v193, 2
        %v364 = vrot.slane %v195, 1
        %v365 = vsel %vm205, %v364, %v363
        %v366 = vsel %vm207, %v364, %v365
        %v367 = vsel %vm210, %v197, %v366
        %v368 = vsel %vm212, %v197, %v367
        %v369 = vrot.slane %v199, 7
        %v370 = vsel %vm215, %v369, %v368
        %v371 = vsel %vm217, %v369, %v370
        %372 = vrot.lane.b32.xlu0 %v371, 71
        %v373 = vpop.permute.xlu0 %372
        %vm375 = vcmask 708152
        %376 = vst.msk [vmem:[#allocation2 + $0x4] sm:$0xf] %vm375, %v373
        %v377 = vrot.slane %v193, 3
        %v378 = vrot.slane %v195, 2
        %v379 = vsel %vm205, %v378, %v377
        %v380 = vsel %vm207, %v378, %v379
        %v381 = vrot.slane %v197, 1
        %v382 = vsel %vm210, %v381, %v380
        %v383 = vsel %vm212, %v381, %v382
        %v384 = vsel %vm215, %v199, %v383
        %v385 = vsel %vm217, %v199, %v384
        %386 = vrot.lane.b32.xlu0 %v385, 89
        %v387 = vpop.permute.xlu0 %386
        %vm389 = vcmask 855752
        %390 = vst.msk [vmem:[#allocation2 + $0x4] sm:$0xf] %vm389, %v387
        %v391 = vcombine.high %v193, %v193
        %v392 = vcombine.high %v195, %v195
        %v393 = vcombine.high %v197, %v197
        %v394 = vcombine.high %v199, %v199
        %v395 = vrot.slane %v392, 7
        %v396 = vsel %vm205, %v395, %v391
        %v397 = vsel %vm207, %v395, %v396
        %v398 = vrot.slane %v393, 6
        %v399 = vsel %vm210, %v398, %v397
        %v400 = vsel %vm212, %v398, %v399
        %v401 = vrot.slane %v394, 5
        %v402 = vsel %vm215, %v401, %v400
        %v403 = vsel %vm217, %v401, %v402
        %404 = vrot.lane.b32.xlu0 %v403, 107
        %v405 = vpop.permute.xlu0 %404
        %vm407 = vcmask 1003352
        %408 = vst.msk [vmem:[#allocation2 + $0x4] sm:$0xf] %vm407, %v405
        %v409 = vrot.slane %v391, 1
        %v410 = vsel %vm205, %v392, %v409
        %v411 = vsel %vm207, %v392, %v410
        %v412 = vrot.slane %v393, 7
        %v413 = vsel %vm210, %v412, %v411
        %v414 = vsel %vm212, %v412, %v413
        %v415 = vrot.slane %v394, 6
        %v416 = vsel %vm215, %v415, %v414
        %v417 = vsel %vm217, %v415, %v416
        %418 = vrot.lane.b32.xlu0 %v417, 125
        %v419 = vpop.permute.xlu0 %418
        %v420 = vrot.slane %v419, 4
        %vm421 = vcmask 1022976
        %v422 = vsel %vm421, %v420, %v419
        %vm424 = vcmask 1044456
        %vm425 = vcmask 105476
        %vm426 = vmor %vm425, %vm424
        %427 = vst.msk [vmem:[#allocation2 + $0x4] sm:$0xff] %vm426, %v422
        %v428 = vrot.slane %v391, 2
        %v429 = vrot.slane %v392, 1
        %v430 = vsel %vm205, %v429, %v428
        %v431 = vsel %vm207, %v429, %v430
        %v432 = vsel %vm210, %v393, %v431
        %v433 = vsel %vm212, %v393, %v432
        %v434 = vrot.slane %v394, 7
        %v435 = vsel %vm215, %v434, %v433
        %v436 = vsel %vm217, %v434, %v435
        %437 = vrot.lane.b32.xlu0 %v436, 15
        %v438 = vpop.permute.xlu0 %437
        %vm440 = vcmask 248952
        %441 = vst.msk [vmem:[#allocation2 + $0x8] sm:$0xf] %vm440, %v438
        %v442 = vrot.slane %v391, 3
        %v443 = vrot.slane %v392, 2
        %v444 = vsel %vm205, %v443, %v442
        %v445 = vsel %vm207, %v443, %v444
        %v446 = vrot.slane %v393, 1
        %v447 = vsel %vm210, %v446, %v445
        %v448 = vsel %vm212, %v446, %v447
        %v449 = vsel %vm215, %v394, %v448
        %v450 = vsel %vm217, %v394, %v449
        %451 = vrot.lane.b32.xlu0 %v450, 33
        %v452 = vpop.permute.xlu0 %451
        %vm454 = vcmask 396552
        %455 = vst.msk [vmem:[#allocation2 + $0x8] sm:$0xf] %vm454, %v452
        %v456 = vld [vmem:[#allocation2] sm:$0xff]
        %v457 = vld [vmem:[#allocation2 + $0x8] sm:$0xff]
        %v460 = vcombine.high %v456, %v456
        %v462 = vpack.c.bf16 %v456, %v456
        %v463 = vpack.c.bf16 %v460, %v460
        %v464 = vpack.c.bf16 %v457, %v457
        %v468 = vunpack.c.l.b16 %v462
        %v469 = vunpack.c.l.b16 %v463
        %v470 = vunpack.c.l.b16 %v464
        %v471 = vpack.c.b16 %v469, %v468
        %v472 = vpack.c.b16 %v470, %v470
        %475 = vst [vmem:[#allocation3] sm:$0x33] %v471
        %476 = vst [vmem:[#allocation3 + $0x8] sm:$0x3] %v472
        %v477 = vcombine.high %v457, %v457
        %v479 = vpack.c.bf16 %v477, %v477
        %v481 = vunpack.c.l.b16 %v479
        %v482 = vpack.c.b16 %v481, %v470
        %v483 = vrot.slane %v471, 6
        %v484 = vrot.slane %v482, 6
        %485 = vrot.lane.b32.xlu0 %v483, 127
        %v486 = vpop.permute.xlu0 %485
        %487 = vrot.lane.b32.xlu0 %v484, 127
        %v488 = vpop.permute.xlu0 %487
        %v489 = vrot.slane %v486, 4
        %v490 = vrot.slane %v488, 4
        %vm491 = vcmask 1043456
        %v492 = vsel %vm491, %v489, %v490
        %vm493 = vcmask 1039360
        %v494 = vsel %vm493, %v486, %v492
        %v495 = vsel %vm493, %v488, %v490
        %498 = vst [vmem:[#allocation3] sm:$0xcc] %v494
        %499 = vst [vmem:[#allocation3 + $0x8] sm:$0xc] %v495
        %500 = vrot.lane.b32.xlu0 %v471, 126
        %v501 = vpop.permute.xlu0 %500
        %502 = vrot.lane.b32.xlu0 %v482, 126
        %v503 = vpop.permute.xlu0 %502
        %v504 = vrot.slane %v501, 4
        %v505 = vrot.slane %v503, 4
        %v506 = vsel %vm491, %v504, %v505
        %vm507 = vcmask 1031168
        %v508 = vsel %vm507, %v501, %v506
        %v509 = vsel %vm507, %v503, %v505
        %512 = vst [vmem:[#allocation3 + $0xc] sm:$0x33] %v508
        %513 = vst [vmem:[#allocation3 + $0x14] sm:$0x3] %v509
        %514 = vrot.lane.b32.xlu0 %v483, 110
        %v515 = vpop.permute.xlu0 %514
        %516 = vrot.lane.b32.xlu0 %v484, 110
        %v517 = vpop.permute.xlu0 %516
        %v518 = vrot.slane %v515, 4
        %v519 = vrot.slane %v517, 4
        %v520 = vsel %vm491, %v518, %v519
        %vm521 = vcmask 900096
        %v522 = vsel %vm521, %v515, %v520
        %v523 = vsel %vm521, %v517, %v519
        %526 = vst [vmem:[#allocation3 + $0xc] sm:$0xcc] %v522
        %527 = vst [vmem:[#allocation3 + $0x14] sm:$0xc] %v523
        %528 = vrot.lane.b32.xlu0 %v471, 109
        %v529 = vpop.permute.xlu0 %528
        %530 = vrot.lane.b32.xlu0 %v482, 109
        %v531 = vpop.permute.xlu0 %530
        %v532 = vrot.slane %v529, 4
        %v533 = vrot.slane %v531, 4
        %v534 = vsel %vm491, %v532, %v533
        %vm535 = vcmask 891904
        %v536 = vsel %vm535, %v529, %v534
        %v537 = vsel %vm535, %v531, %v533
        %540 = vst [vmem:[#allocation3 + $0x18] sm:$0x33] %v536
        %541 = vst [vmem:[#allocation3 + $0x20] sm:$0x3] %v537
        %542 = vrot.lane.b32.xlu0 %v483, 108
        %v543 = vpop.permute.xlu0 %542
        %544 = vrot.lane.b32.xlu0 %v484, 108
        %v545 = vpop.permute.xlu0 %544
        %v546 = vrot.slane %v543, 4
        %v547 = vrot.slane %v545, 4
        %v548 = vsel %vm491, %v546, %v547
        %vm549 = vcmask 883712
        %v550 = vsel %vm549, %v543, %v548
        %v551 = vsel %vm549, %v545, %v547
        %554 = vst [vmem:[#allocation3 + $0x18] sm:$0xcc] %v550
        %555 = vst [vmem:[#allocation3 + $0x20] sm:$0xc] %v551
        %556 = vrot.lane.b32.xlu0 %v471, 92
        %v557 = vpop.permute.xlu0 %556
        %558 = vrot.lane.b32.xlu0 %v482, 92
        %v559 = vpop.permute.xlu0 %558
        %v560 = vrot.slane %v557, 4
        %v561 = vrot.slane %v559, 4
        %v562 = vsel %vm491, %v560, %v561
        %vm563 = vcmask 752640
        %v564 = vsel %vm563, %v557, %v562
        %v565 = vsel %vm563, %v559, %v561
        %568 = vst [vmem:[#allocation3 + $0x24] sm:$0x33] %v564
        %569 = vst [vmem:[#allocation3 + $0x2c] sm:$0x3] %v565
        %570 = vrot.lane.b32.xlu0 %v483, 91
        %v571 = vpop.permute.xlu0 %570
        %572 = vrot.lane.b32.xlu0 %v484, 91
        %v573 = vpop.permute.xlu0 %572
        %v574 = vrot.slane %v571, 4
        %v575 = vrot.slane %v573, 4
        %v576 = vsel %vm491, %v574, %v575
        %vm577 = vcmask 744448
        %v578 = vsel %vm577, %v571, %v576
        %v579 = vsel %vm577, %v573, %v575
        %582 = vst [vmem:[#allocation3 + $0x24] sm:$0xcc] %v578
        %583 = vst [vmem:[#allocation3 + $0x2c] sm:$0xc] %v579
        %584 = vrot.lane.b32.xlu0 %v471, 90
        %v585 = vpop.permute.xlu0 %584
        %586 = vrot.lane.b32.xlu0 %v482, 90
        %v587 = vpop.permute.xlu0 %586
        %v588 = vrot.slane %v585, 4
        %v589 = vrot.slane %v587, 4
        %v590 = vsel %vm491, %v588, %v589
        %vm591 = vcmask 736256
        %v592 = vsel %vm591, %v585, %v590
        %v593 = vsel %vm591, %v587, %v589
        %596 = vst [vmem:[#allocation3 + $0x30] sm:$0x33] %v592
        %597 = vst [vmem:[#allocation3 + $0x38] sm:$0x3] %v593
        %v598 = vld [vmem:[%s1] sm:$0xf]
        %v599 = vld [vmem:[#allocation3] sm:$0xff]
        %v600 = vld [vmem:[#allocation3 + $0x8] sm:$0xf]
        %v601 = vld [vmem:[#allocation3 + $0xc] sm:$0xff]
        %v602 = vld [vmem:[#allocation3 + $0x14] sm:$0xf]
        %v603 = vld [vmem:[#allocation3 + $0x18] sm:$0xff]
        %v604 = vld [vmem:[#allocation3 + $0x20] sm:$0xf]
        %v605 = vld [vmem:[#allocation3 + $0x24] sm:$0xff]
        %v606 = vld [vmem:[#allocation3 + $0x2c] sm:$0xf]
        %v607 = vld [vmem:[#allocation3 + $0x30] sm:$0x33]
        %v608 = vld [vmem:[#allocation3 + $0x38] sm:$0x3]
        %v609 = vld [vmem:[%s2] sm:$0xff]
        %611 = vset.pattern.permute.xlu0 0
        %612 = vperm.xlu0 %611, %v609
        %v613 = vpop.permute.xlu0 %612
        %v625 = vunpack.c.l.b16 %v599
        %v626 = vunpack.c.h.b16 %v599
        %v627 = vunpack.c.l.b16 %v600
        %v628 = vunpack.c.l.b16 %v601
        %v629 = vunpack.c.h.b16 %v601
        %v630 = vunpack.c.l.b16 %v602
        %v631 = vunpack.c.l.b16 %v603
        %v632 = vunpack.c.h.b16 %v603
        %v633 = vunpack.c.l.b16 %v604
        %v634 = vunpack.c.l.b16 %v605
        %v635 = vunpack.c.h.b16 %v605
        %v636 = vunpack.c.l.b16 %v606
        %v637 = vunpack.c.l.b16 %v607
        %v638 = vunpack.c.h.b16 %v607
        %v639 = vunpack.c.l.b16 %v608
        %v640 = vpack.c.b16 %v628, %v625
        %v641 = vpack.c.b16 %v629, %v626
        %v642 = vpack.c.b16 %v630, %v627
        %v643 = vpack.c.b16 %v634, %v631
        %v644 = vpack.c.b16 %v635, %v632
        %v645 = vpack.c.b16 %v636, %v633
        %v646 = vpack.c.b16 %v637, %v637
        %v647 = vpack.c.b16 %v638, %v638
        %v648 = vpack.c.b16 %v639, %v639
        %vm655 = vcmask 293888
        %v657 = vsel %vm655, %v598, 0
        %vm659 = vcmask 1041408
        %v661 = vsel %vm659, %v646, 0
        %v664 = vsel %vm659, %v647, 0
        %v667 = vsel %vm659, %v648, 0
        %669 = vmatprep.subr.bf16.mxu0 0
        %670 = vmatpush1.bf16.msra.mxu0 0
        %671 = vmatprep.subr.bf16.mxu0 0
        %672 = vmatpush1.bf16.msra.mxu0 0
        %673 = vmatprep.subr.bf16.mxu0 0
        %674 = vmatpush1.bf16.msra.mxu0 0
        %675 = vmatprep.subr.bf16.mxu0 0
        %676 = vmatpush1.bf16.msra.mxu0 0
        %677 = vmatprep.subr.bf16.mxu0 0
        %678 = vmatpush1.bf16.msra.mxu0 0
        %679 = vmatprep.subr.bf16.mxu0 %v664
        %680 = vmatpush1.bf16.msra.mxu0 %v661
        %681 = vmatprep.subr.bf16.mxu0 %v644
        %682 = vmatpush1.bf16.msra.mxu0 %v643
        %683 = vmatprep.subr.bf16.mxu0 %v641
        %684 = vmatpush1.bf16.msra.mxu0 %v640
        %685 = vmatprep.subr.bf16.mxu0 0
        %686 = vmatpush2.bf16.msra.mxu0 0
        %687 = vmatprep.subr.bf16.mxu0 0
        %688 = vmatpush2.bf16.msra.mxu0 0
        %689 = vmatprep.subr.bf16.mxu0 0
        %690 = vmatpush2.bf16.msra.mxu0 0
        %691 = vmatprep.subr.bf16.mxu0 0
        %692 = vmatpush2.bf16.msra.mxu0 0
        %693 = vmatprep.subr.bf16.mxu0 0
        %694 = vmatpush2.bf16.msra.mxu0 0
        %695 = vmatprep.subr.bf16.mxu0 0
        %696 = vmatpush2.bf16.msra.mxu0 0
        %697 = vmatprep.subr.bf16.mxu0 0
        %698 = vmatpush2.bf16.msra.mxu0 0
        %699 = vmatprep.subr.bf16.mxu0 0
        %700 = vmatpush2.bf16.msra.mxu0 0
        %701 = vmatprep.mubr.bf16.mxu0 0
        %702 = vmatmul.mubr.bf16.gmra.mxu0 %v657
        %v703 = vpop.f32.mrf.mxu0
        %v704 = vadd.f32 %v613, %v703
        %v705 = vpop.f32.mrf.mxu0
        %v706 = vadd.f32 %v613, %v705
        %v707 = vpop.f32.mrf.mxu0
        %v708 = vpop.f32.mrf.mxu0
        %709 = vdwg.mxu0
        %710 = vmatprep.subr.bf16.mxu0 0
        %711 = vmatpush1.bf16.msra.mxu0 0
        %712 = vmatprep.subr.bf16.mxu0 0
        %713 = vmatpush1.bf16.msra.mxu0 0
        %714 = vmatprep.subr.bf16.mxu0 0
        %715 = vmatpush1.bf16.msra.mxu0 0
        %716 = vmatprep.subr.bf16.mxu0 0
        %717 = vmatpush1.bf16.msra.mxu0 0
        %718 = vmatprep.subr.bf16.mxu0 0
        %719 = vmatpush1.bf16.msra.mxu0 0
        %720 = vmatprep.subr.bf16.mxu0 0
        %721 = vmatpush1.bf16.msra.mxu0 %v667
        %722 = vmatprep.subr.bf16.mxu0 0
        %723 = vmatpush1.bf16.msra.mxu0 %v645
        %724 = vmatprep.subr.bf16.mxu0 0
        %725 = vmatpush1.bf16.msra.mxu0 %v642
        %726 = vmatprep.subr.bf16.mxu0 0
        %727 = vmatpush2.bf16.msra.mxu0 0
        %728 = vmatprep.subr.bf16.mxu0 0
        %729 = vmatpush2.bf16.msra.mxu0 0
        %730 = vmatprep.subr.bf16.mxu0 0
        %731 = vmatpush2.bf16.msra.mxu0 0
        %732 = vmatprep.subr.bf16.mxu0 0
        %733 = vmatpush2.bf16.msra.mxu0 0
        %734 = vmatprep.subr.bf16.mxu0 0
        %735 = vmatpush2.bf16.msra.mxu0 0
        %736 = vmatprep.subr.bf16.mxu0 0
        %737 = vmatpush2.bf16.msra.mxu0 0
        %738 = vmatprep.subr.bf16.mxu0 0
        %739 = vmatpush2.bf16.msra.mxu0 0
        %740 = vmatprep.subr.bf16.mxu0 0
        %741 = vmatpush2.bf16.msra.mxu0 0
        %742 = vmatprep.mubr.bf16.mxu0 0
        %743 = vmatmul.mubr.bf16.gmra.mxu0 %v657
        %v744 = vpop.f32.mrf.mxu0
        %v745 = vadd.f32 %v613, %v744
        %v746 = vpop.f32.mrf.mxu0
        %v747 = vpop.f32.mrf.mxu0
        %v748 = vpop.f32.mrf.mxu0
        %749 = vdwg.mxu0
        %vm750 = vcmp.ge.f32.partialorder %v704, 0.0
        %vm751 = vcmp.ge.f32.partialorder %v706, 0.0
        %vm752 = vcmp.ge.f32.partialorder %v745, 0.0
        %v753 = vmul.f32 %v704, 0.2
        %v754 = vmul.f32 %v706, 0.2
        %v755 = vmul.f32 %v745, 0.2
        %v756 = vsel %vm750, %v704, %v753
        %v757 = vsel %vm751, %v706, %v754
        %v758 = vsel %vm752, %v745, %v755
        %759 = vst [vmem:[%s188] sm:$0xff] %v756
        %760 = vst [vmem:[%s188 + $0x8] sm:$0xff] %v757
        %761 = vst [vmem:[%s188 + $0x10] sm:$0xff] %v758
        %s762 = sand.u32 %s96, 1
        %s763 = scalar_lea.sflag [#allocation6], %s762
        %s764 = sand.u32 %s96, 1
        %s765 = smul.addr %s764, 24
        %s766 = scalar_lea.vmem [#allocation7], %s765
        // Predicated region
        $region37: #{tpu_custom_call.1} parent=31 // pred_check
          %p767 = pneg %p106
        $region38: #{tpu_custom_call.1} parent=31 // pred_check_branch
          %769 = sbr.rel (%p767) target = $region40
        $region39: #{tpu_custom_call.1} parent=31 // pred_region
          %s771 = ssub.s32 384, 384
          %772 = vsyncadd %s763, %s771
          %s773 = smul.addr %s20, 3
          %s774 = smul.addr %s773, 128
          %s775 = scalar_lea.hbm %s3, %s774
          %s777 = sshll.u32 %s766, 4
          %s778 = int_to_ptr.vmem [resolvable:$true] %s777
          %780 = dma.vmem_to_hbm [thread:$0]  %s778, 384, %s775, %s763
        $region40: #{tpu_custom_call.1} parent=31 // pred_fallthru
          _
      $region32: #{tpu_custom_call.1} parent=5 // pred_fallthru
        _
      %p781 = scmp.le.s32.totalorder 2, %s15
      // Predicated region
      $region41: #{tpu_custom_call.1} parent=5 // pred_check
        %p782 = pneg %p781
      $region42: #{tpu_custom_call.1} parent=5 // pred_check_branch
        %784 = sbr.rel (%p782) target = $region44
      $region43: #{tpu_custom_call.1} parent=5 // pred_region
        %s785 = ssub.s32 %s15, 2
        // Predicated region
        $region45: #{tpu_custom_call.1} parent=43 // pred_check
          %p786 = pneg %p112
        $region46: #{tpu_custom_call.1} parent=43 // pred_check_branch
          %788 = sbr.rel (%p786) target = $region48
        $region47: #{tpu_custom_call.1} parent=43 // pred_region
          %s789 = sand.u32 %s97, 1
          %s790 = scalar_lea.sflag [#allocation6], %s789
          %s791 = sand.u32 %s97, 1
          %s792 = smul.addr %s791, 24
          %s793 = scalar_lea.vmem [#allocation7], %s792
          %794 = dma.done %s790, 384
        $region48: #{tpu_custom_call.1} parent=43 // pred_fallthru
          _
      $region44: #{tpu_custom_call.1} parent=5 // pred_fallthru
        _
    $region6: #{tpu_custom_call.1} parent=1 // loop_footer
      %s19 = sadd.s32 1, %s15
    $region7: #{tpu_custom_call.1} parent=1 // loop_footer_branch
      %14 = sbr.rel target = $region3
    $region8: #{tpu_custom_call.1} parent=1 // loop_exit
      _
    %795 = vsyncpa [#allocation5], 1
    %s796 = scalar_lea.sflag [#allocation5], 1
    %797 = vsyncpa %s796, 1
    %798 = vsyncpa [#allocation6], 1
    %s799 = scalar_lea.sflag [#allocation6], 1
    %800 = vsyncpa %s799, 1

</llo_original>
